<compile_context>
chip_gen: v7x
topology: tpu7x:2x2x1
jax: 0.10.0
libtpu: 0.0.40
codegen_flags: <defaults>
</compile_context>

<pallas_src>
import functools

import jax
import jax.numpy as jnp
from jax.experimental import pallas as pl
from jax.experimental.pallas import tpu as pltpu

LANE = 128        # padded lane width of the hidden / logits slabs
BIAS_ROWS = 8     # sublane-padded rows of the bias slab (rows 0..2 used)
DEFAULT_TILE_B = 512


def _mlp(x_ref, w_ref, b_ref):
    """Shared 2x(Linear+Tanh) + Linear body.  Dropout is eval-mode identity."""
    # TODO(synk): training-mode stochastic dropout via pltpu.prng_random_bits.
    x = x_ref[...]                                    # (TB, D) f32
    d = x_ref.shape[1]
    b = b_ref[...]                                    # (8, LANE) f32
    h = jnp.dot(x, w_ref[0][:d, :], preferred_element_type=jnp.float32)
    h = jnp.tanh(h + b[0:1])
    h = jnp.dot(h, w_ref[1], preferred_element_type=jnp.float32)
    h = jnp.tanh(h + b[1:2])
    # Final Linear at padded lane width; padded lanes carry bias -1e30 and are
    # therefore already "masked" for the softmax below / sliced off by wrapper.
    z = jnp.dot(h, w_ref[2], preferred_element_type=jnp.float32) + b[2:3]
    return z


def _logits_kernel(x_ref, w_ref, b_ref, logits_ref):
    logits_ref[...] = _mlp(x_ref, w_ref, b_ref)       # lane-dense (TB, 128) store


def _loss_kernel(x_ref, y_ref, w_ref, b_ref, nll_ref):
    z = _mlp(x_ref, w_ref, b_ref)                     # (TB, 128); pad lanes ~ -1e30

    # Row-wise logsumexp (padded lanes underflow to 0 in the exp).
    m = jnp.max(z, axis=-1, keepdims=True)
    lse = jnp.log(jnp.sum(jnp.exp(z - m), axis=-1, keepdims=True)) + m

    # CrossEntropy NLL partial sum for this batch tile.  Padding rows carry
    # label -1, which matches no lane, so they contribute 0.  (Out-of-range
    # labels >= num_labels produce garbage instead of raising, unlike torch.)
    y_col = y_ref[...]                                # (TB, 1) int32, VMEM
    col = jax.lax.broadcasted_iota(jnp.int32, z.shape, 1)
    nll_ref[0, 0] = jnp.sum(jnp.where(col == y_col, lse - z, 0.0))


def pack_params(params, lane=LANE):
    """Pack (w1,b1,w2,b2,w3,b3) into one weight slab and one bias slab."""
    w1, b1, w2, b2, w3, b3 = params
    d, h = w1.shape
    l = w3.shape[1]
    assert d <= lane and h <= lane and l <= lane, "dims must be <= 128"
    w = jnp.zeros((3, lane, lane), jnp.float32)
    w = w.at[0, :d, :h].set(w1.astype(jnp.float32))
    w = w.at[1, :h, :h].set(w2.astype(jnp.float32))
    w = w.at[2, :h, :l].set(w3.astype(jnp.float32))
    b = jnp.zeros((BIAS_ROWS, lane), jnp.float32)
    b = b.at[0, :h].set(b1.reshape(-1).astype(jnp.float32))
    b = b.at[1, :h].set(b2.reshape(-1).astype(jnp.float32))
    # Row 2: pre-mask padded logit lanes with -1e30 so the kernel needs no
    # `col < num_labels` iota/compare/select.
    b = b.at[2, :].set(jnp.full((lane,), -1e30, jnp.float32))
    b = b.at[2, :l].set(b3.reshape(-1).astype(jnp.float32))
    return w, b


@functools.partial(jax.jit,
                   static_argnames=("num_labels", "output_logits", "tile_b"))
def classification_head(x, y, w_slab, b_slab, num_labels,
                        output_logits=False, tile_b=DEFAULT_TILE_B):
    """Pallas implementation of ClassificationHead.forward(x, y, output_logits)."""
    B, D = x.shape
    assert num_labels <= LANE

    # Tile the batch; clamp the tile to the (8-aligned) batch for small inputs.
    b8 = -(-B // 8) * 8
    tb = min(tile_b, b8)
    tb = -(-tb // 8) * 8
    n_tiles = -(-B // tb)
    B_pad = n_tiles * tb

    x = x.astype(jnp.float32)
    if B_pad != B:                       # pad only the ragged tail tile
        x = jnp.concatenate(
            [x, jnp.zeros((B_pad - B, D), jnp.float32)], axis=0)

    w_spec = pl.BlockSpec((3, LANE, LANE), lambda i: (0, 0, 0))      # resident
    b_spec = pl.BlockSpec((BIAS_ROWS, LANE), lambda i: (0, 0))       # resident
    x_spec = pl.BlockSpec((tb, D), lambda i: (i, 0))
    cp = pltpu.CompilerParams(dimension_semantics=("parallel",))

    if output_logits:
        logits_pad = pl.pallas_call(
            _logits_kernel,
            out_shape=jax.ShapeDtypeStruct((B_pad, LANE), jnp.float32),
            grid=(n_tiles,),
            in_specs=[x_spec, w_spec, b_spec],
            out_specs=pl.BlockSpec((tb, LANE), lambda i: (i, 0)),
            compiler_params=cp,
        )(x, w_slab, b_slab)
        return logits_pad[:B, :num_labels]

    y = y.astype(jnp.int32).reshape(B, 1)
    if B_pad != B:
        y = jnp.concatenate(
            [y, jnp.full((B_pad - B, 1), -1, jnp.int32)], axis=0)

    # Per-tile NLL partial sums -> (n_tiles, 1) scalar output (SMEM blocks);
    # summed + mean-normalized in the wrapper (also handles B % tb != 0).
    partials = pl.pallas_call(
        _loss_kernel,
        out_shape=jax.ShapeDtypeStruct((n_tiles, 1), jnp.float32),
        grid=(n_tiles,),
        in_specs=[
            x_spec,
            pl.BlockSpec((tb, 1), lambda i: (i, 0)),                 # labels
            w_spec,
            b_spec,
        ],
        out_specs=pl.BlockSpec((1, 1), lambda i: (i, 0),
                               memory_space=pltpu.SMEM),
        compiler_params=cp,
    )(x, y, w_slab, b_slab)
    return jnp.sum(partials) / B


def init_params(key, output_size, hidden_size, num_labels):
    """Deterministic nn.Linear-style init: U(-1/sqrt(fan_in), 1/sqrt(fan_in))."""
    def linear(k, fan_in, fan_out):
        kw, kb = jax.random.split(k)
        bound = 1.0 / (fan_in ** 0.5)
        w = jax.random.uniform(kw, (fan_in, fan_out), jnp.float32, -bound, bound)
        b = jax.random.uniform(kb, (1, fan_out), jnp.float32, -bound, bound)
        return w, b

    k1, k2, k3 = jax.random.split(key, 3)
    w1, b1 = linear(k1, output_size, hidden_size)
    w2, b2 = linear(k2, hidden_size, hidden_size)
    w3, b3 = linear(k3, hidden_size, num_labels)
    return (w1, b1, w2, b2, w3, b3)


def _reference(x, y, params):
    w1, b1, w2, b2, w3, b3 = params
    h = jnp.tanh(x @ w1 + b1)
    h = jnp.tanh(h @ w2 + b2)
    logits = h @ w3 + b3
    logp = jax.nn.log_softmax(logits, axis=-1)
    nll = -jnp.take_along_axis(logp, y[:, None], axis=-1)[:, 0]
    return logits, jnp.mean(nll)


if __name__ == "__main__":
    B, D, H, L = 48, 32, 32, 8

    key = jax.random.PRNGKey(0)
    kx, ky, kp = jax.random.split(key, 3)
    x = jax.random.normal(kx, (B, D), dtype=jnp.float32)
    y = jax.random.randint(ky, (B,), 0, L, dtype=jnp.int32)
    params = init_params(kp, D, H, L)
    w_slab, b_slab = pack_params(params)

    # Default path: tile clamps to the whole (8-aligned) batch -> grid=(1,).
    loss = classification_head(x, y, w_slab, b_slab, num_labels=L)
    logits = classification_head(x, y, w_slab, b_slab, num_labels=L,
                                 output_logits=True)
    # Multi-tile path with a ragged tail: exercises per-tile partial sums,
    # tail padding and the "parallel" batch axis (42 rows, tile_b=16 -> 3 tiles).
    loss_mt = classification_head(x[:42], y[:42], w_slab, b_slab,
                                  num_labels=L, tile_b=16)
    jax.block_until_ready((loss, logits, loss_mt))

    ref_logits, ref_loss = _reference(x, y, params)
    _, ref_loss_mt = _reference(x[:42], y[:42], params)
    assert jnp.allclose(logits, ref_logits, atol=1e-5, rtol=1e-5)
    assert jnp.allclose(loss, ref_loss, atol=1e-5, rtol=1e-5)
    assert jnp.allclose(loss_mt, ref_loss_mt, atol=1e-5, rtol=1e-5)

    print("KERNEL_OK")
</pallas_src>

<mosaic_0001>
module attributes {stable_mosaic.version = 11 : i64} {
  func.func @_loss_kernel(%arg0: i32, %arg1: memref<48x32xf32, #tpu.memory_space<vmem>>, %arg2: memref<48x1xi32, #tpu.memory_space<vmem>>, %arg3: memref<3x128x128xf32, #tpu.memory_space<vmem>>, %arg4: memref<8x128xf32, #tpu.memory_space<vmem>>, %arg5: memref<1x1xf32, #tpu.memory_space<smem>>) attributes {dimension_semantics = [#tpu.dimension_semantics<parallel>], iteration_bounds = array<i64: 1>, scalar_prefetch = 0 : i64, scratch_operands = 0 : i64, tpu.core_type = #tpu.core_type<tc>, window_params = [{transform_indices = @transform_0, window_bounds = array<i64: 48, 32>}, {transform_indices = @transform_1, window_bounds = array<i64: 48, 1>}, {pipeline_mode = #tpu.pipeline_mode<synchronous>, transform_indices = @transform_2, window_bounds = array<i64: 3, 128, 128>}, {pipeline_mode = #tpu.pipeline_mode<synchronous>, transform_indices = @transform_3, window_bounds = array<i64: 8, 128>}, {transform_indices = @transform_4, window_bounds = array<i64: 1, 1>}]} {
    %c0 = arith.constant 0 : index
    %c0_0 = arith.constant 0 : index
    %0 = vector.load %arg1[%c0, %c0_0] : memref<48x32xf32, #tpu.memory_space<vmem>>, vector<48x32xf32>
    %c0_1 = arith.constant 0 : index
    %c0_2 = arith.constant 0 : index
    %1 = vector.load %arg4[%c0_1, %c0_2] : memref<8x128xf32, #tpu.memory_space<vmem>>, vector<8x128xf32>
    %c0_3 = arith.constant 0 : index
    %c0_4 = arith.constant 0 : index
    %c0_5 = arith.constant 0 : index
    %2 = vector.load %arg3[%c0_3, %c0_4, %c0_5] : memref<3x128x128xf32, #tpu.memory_space<vmem>>, vector<1x128x128xf32>
    %3 = vector.shape_cast %2 : vector<1x128x128xf32> to vector<128x128xf32>
    %4 = vector.extract_strided_slice %3 {offsets = [0, 0], sizes = [32, 128], strides = [1, 1]} : vector<128x128xf32> to vector<32x128xf32>
    %cst = arith.constant dense<0.000000e+00> : vector<48x128xf32>
    %5 = tpu.matmul %0, %4, %cst {dimension_numbers = #tpu.dot_dimension_numbers<[1], [0], [0], [1], [0, 0, 1, 1], [], []>} : vector<48x32xf32>, vector<32x128xf32>, vector<48x128xf32> -> vector<48x128xf32>
    %6 = vector.extract_strided_slice %1 {offsets = [0, 0], sizes = [1, 128], strides = [1, 1]} : vector<8x128xf32> to vector<1x128xf32>
    %7 = vector.broadcast %6 : vector<1x128xf32> to vector<48x128xf32>
    %8 = arith.addf %5, %7 : vector<48x128xf32>
    %9 = math.tanh %8 : vector<48x128xf32>
    %c1 = arith.constant 1 : index
    %c0_6 = arith.constant 0 : index
    %c0_7 = arith.constant 0 : index
    %10 = vector.load %arg3[%c1, %c0_6, %c0_7] : memref<3x128x128xf32, #tpu.memory_space<vmem>>, vector<1x128x128xf32>
    %11 = vector.shape_cast %10 : vector<1x128x128xf32> to vector<128x128xf32>
    %cst_8 = arith.constant dense<0.000000e+00> : vector<48x128xf32>
    %12 = tpu.matmul %9, %11, %cst_8 {dimension_numbers = #tpu.dot_dimension_numbers<[1], [0], [0], [1], [0, 0, 1, 1], [], []>} : vector<48x128xf32>, vector<128x128xf32>, vector<48x128xf32> -> vector<48x128xf32>
    %13 = vector.extract_strided_slice %1 {offsets = [1, 0], sizes = [1, 128], strides = [1, 1]} : vector<8x128xf32> to vector<1x128xf32>
    %14 = vector.broadcast %13 : vector<1x128xf32> to vector<48x128xf32>
    %15 = arith.addf %12, %14 : vector<48x128xf32>
    %16 = math.tanh %15 : vector<48x128xf32>
    %c2 = arith.constant 2 : index
    %c0_9 = arith.constant 0 : index
    %c0_10 = arith.constant 0 : index
    %17 = vector.load %arg3[%c2, %c0_9, %c0_10] : memref<3x128x128xf32, #tpu.memory_space<vmem>>, vector<1x128x128xf32>
    %18 = vector.shape_cast %17 : vector<1x128x128xf32> to vector<128x128xf32>
    %cst_11 = arith.constant dense<0.000000e+00> : vector<48x128xf32>
    %19 = tpu.matmul %16, %18, %cst_11 {dimension_numbers = #tpu.dot_dimension_numbers<[1], [0], [0], [1], [0, 0, 1, 1], [], []>} : vector<48x128xf32>, vector<128x128xf32>, vector<48x128xf32> -> vector<48x128xf32>
    %20 = vector.extract_strided_slice %1 {offsets = [2, 0], sizes = [1, 128], strides = [1, 1]} : vector<8x128xf32> to vector<1x128xf32>
    %21 = vector.broadcast %20 : vector<1x128xf32> to vector<48x128xf32>
    %22 = arith.addf %19, %21 : vector<48x128xf32>
    %cst_12 = arith.constant dense<0xFF800000> : vector<48xf32>
    %23 = vector.multi_reduction <maximumf>, %22, %cst_12 [1] : vector<48x128xf32> to vector<48xf32>
    %24 = vector.shape_cast %23 : vector<48xf32> to vector<48x1xf32>
    %25 = vector.broadcast %24 : vector<48x1xf32> to vector<48x128xf32>
    %26 = arith.subf %22, %25 : vector<48x128xf32>
    %27 = math.exp %26 : vector<48x128xf32>
    %cst_13 = arith.constant dense<0.000000e+00> : vector<48xf32>
    %28 = vector.multi_reduction <add>, %27, %cst_13 [1] : vector<48x128xf32> to vector<48xf32>
    %29 = vector.shape_cast %28 : vector<48xf32> to vector<48x1xf32>
    %30 = math.log %29 : vector<48x1xf32>
    %31 = arith.addf %30, %24 : vector<48x1xf32>
    %c0_14 = arith.constant 0 : index
    %c0_15 = arith.constant 0 : index
    %32 = vector.load %arg2[%c0_14, %c0_15] : memref<48x1xi32, #tpu.memory_space<vmem>>, vector<48x1xi32>
    %33 = tpu.iota {dimensions = array<i32: 1>} : vector<48x128xi32>
    %34 = vector.broadcast %32 : vector<48x1xi32> to vector<48x128xi32>
    %35 = arith.cmpi eq, %33, %34 : vector<48x128xi32>
    %36 = vector.broadcast %31 : vector<48x1xf32> to vector<48x128xf32>
    %37 = arith.subf %36, %22 : vector<48x128xf32>
    %cst_16 = arith.constant 0.000000e+00 : f32
    %38 = vector.broadcast %cst_16 : f32 to vector<48x128xf32>
    %39 = arith.select %35, %37, %38 : vector<48x128xi1>, vector<48x128xf32>
    %40 = vector.shape_cast %39 : vector<48x128xf32> to vector<1x48x128xf32>
    %cst_17 = arith.constant dense<0.000000e+00> : vector<1xf32>
    %41 = vector.multi_reduction <add>, %40, %cst_17 [1, 2] : vector<1x48x128xf32> to vector<1xf32>
    %42 = vector.shape_cast %41 : vector<1xf32> to vector<1x1x1xf32>
    %43 = vector.extract %42[0, 0, 0] : f32 from vector<1x1x1xf32>
    %c0_18 = arith.constant 0 : index
    %c0_19 = arith.constant 0 : index
    %44 = memref.load %arg5[%c0_18, %c0_19] : memref<1x1xf32, #tpu.memory_space<smem>>
    memref.store %43, %arg5[%c0_18, %c0_19] : memref<1x1xf32, #tpu.memory_space<smem>>
    return
  }
  func.func @transform_0(%arg0: i32) -> (i32, i32) {
    %c0_i32 = arith.constant 0 : i32
    %c0_i32_0 = arith.constant 0 : i32
    return %arg0, %c0_i32 : i32, i32
  }
  func.func @transform_1(%arg0: i32) -> (i32, i32) {
    %c0_i32 = arith.constant 0 : i32
    %c0_i32_0 = arith.constant 0 : i32
    return %arg0, %c0_i32 : i32, i32
  }
  func.func @transform_2(%arg0: i32) -> (i32, i32, i32) {
    %c0_i32 = arith.constant 0 : i32
    %c0_i32_0 = arith.constant 0 : i32
    %c0_i32_1 = arith.constant 0 : i32
    %c0_i32_2 = arith.constant 0 : i32
    return %c0_i32, %c0_i32_0, %c0_i32_1 : i32, i32, i32
  }
  func.func @transform_3(%arg0: i32) -> (i32, i32) {
    %c0_i32 = arith.constant 0 : i32
    %c0_i32_0 = arith.constant 0 : i32
    %c0_i32_1 = arith.constant 0 : i32
    return %c0_i32, %c0_i32_0 : i32, i32
  }
  func.func @transform_4(%arg0: i32) -> (i32, i32) {
    %c0_i32 = arith.constant 0 : i32
    %c0_i32_0 = arith.constant 0 : i32
    return %arg0, %c0_i32 : i32, i32
  }
}

</mosaic_0001>

<llo_original>
// kernel: classification_head.1
$region0: #{classification_head.1}
  #allocation0 [shape = 'u32[]', space=smem, size = 0x4, offset = 0x4, fixed_abs, tag = 'smem constant byte address 0x4 - core index']
  #allocation1 [shape = 'u32[144,128]{1,0:T(1,128)}', space=vmem, size = 0x12000, scoped, tag = 'internal scratch']
  %s0 = inlined_call_operand.vmem [shape: f32[48,32], index: 0, kind: input, shape index: {}]
  %s1 = inlined_call_operand.vmem [shape: s32[48,1], index: 1, kind: input, shape index: {}]
  %s2 = inlined_call_operand.hbm [shape: f32[3,128,128], index: 2, kind: input, shape index: {}]
  %s3 = inlined_call_operand.vmem [shape: f32[8,128], index: 3, kind: input, shape index: {}]
  %s4 = inlined_call_operand.hbm [shape: f32[1,1], index: 4, kind: output, shape index: {}]
  %s5 = sld [smem:[#allocation0]]
  $region30: #{classification_head.1} parent=0
    _
  %s7 = ssub.s32 1, %s5
  %s8 = scalar_select 0, %s7, %s5
  $region1: #{classification_head.1} parent=0
    #allocation2 [shape = 'u8[196608]{0}', space=vmem, size = 0x30000, scoped, tag = 'input window, operand 2, single buffered']
    #allocation3 [shape = 's32[1]{0}', space=sflag, size = 0x4, scoped, tag = 'scoped memory for classification_head.1']
    #allocation4 [shape = 's32[1]{0}', space=sflag, size = 0x4, scoped, tag = 'scoped memory for classification_head.1']
    #allocation5 [shape = 'u8[512]{0}', space=smem, size = 0x200, scoped, tag = 'output window, operand 0, single buffered']
    %9 = vsyncpa [#allocation3], 0
    %10 = vsyncpa [#allocation4], 0
    // Predicated region
    $region2: #{classification_head.1} parent=1 // pred_check
      _
    $region3: #{classification_head.1} parent=1 // pred_check_branch
      %12 = sbr.rel (0) target = $region5
    $region4: #{classification_head.1} parent=1 // pred_region
      _
    $region5: #{classification_head.1} parent=1 // pred_fallthru
      _
    // Predicated region
    $region6: #{classification_head.1} parent=1 // pred_check
      _
    $region7: #{classification_head.1} parent=1 // pred_check_branch
      %14 = sbr.rel (0) target = $region9
    $region8: #{classification_head.1} parent=1 // pred_region
      _
    $region9: #{classification_head.1} parent=1 // pred_fallthru
      _
    // Predicated region
    $region10: #{classification_head.1} parent=1 // pred_check
      _
    $region11: #{classification_head.1} parent=1 // pred_check_branch
      %16 = sbr.rel (0) target = $region13
    $region12: #{classification_head.1} parent=1 // pred_region
      %s18 = ssub.s32 6144, 6144
      %19 = vsyncadd [#allocation3], %s18
      %s20 = sshll.u32 [#allocation2], 4
      %s21 = int_to_ptr.vmem [resolvable:$true] %s20
      %26 = dma.hbm_to_vmem [thread:$0]  %s2, 6144, %s21, [#allocation3], 128, 128, 8
    $region13: #{classification_head.1} parent=1 // pred_fallthru
      _
    // Predicated region
    $region14: #{classification_head.1} parent=1 // pred_check
      _
    $region15: #{classification_head.1} parent=1 // pred_check_branch
      %28 = sbr.rel (0) target = $region17
    $region16: #{classification_head.1} parent=1 // pred_region
      _
    $region17: #{classification_head.1} parent=1 // pred_fallthru
      _
    // Predicated region
    $region18: #{classification_head.1} parent=1 // pred_check
      _
    $region19: #{classification_head.1} parent=1 // pred_check_branch
      %30 = sbr.rel (0) target = $region21
    $region20: #{classification_head.1} parent=1 // pred_region
      %31 = dma.done [#allocation3], 6144
    $region21: #{classification_head.1} parent=1 // pred_fallthru
      _
    %v32 = vld [vmem:[%s0] sm:$0xff]
    %v33 = vld [vmem:[%s0 + $0x8] sm:$0xff]
    %v34 = vld [vmem:[%s0 + $0x10] sm:$0xff]
    %v35 = vld [vmem:[%s0 + $0x18] sm:$0xff]
    %v36 = vld [vmem:[%s0 + $0x20] sm:$0xff]
    %v37 = vld [vmem:[%s0 + $0x28] sm:$0xff]
    %v38 = vld [vmem:[%s3] sm:$0xff]
    %v39 = vld [vmem:[#allocation2] sm:$0xff]
    %v40 = vld [vmem:[#allocation2 + $0x8] sm:$0xff]
    %v41 = vld [vmem:[#allocation2 + $0x10] sm:$0xff]
    %v42 = vld [vmem:[#allocation2 + $0x18] sm:$0xff]
    %v43 = vlaneseq
    %v44 = vshrl.u32 %v43, 7
    %v45 = vsub.s32 0, %v44
    %v46 = vrot.slane %v38, %v45
    %vm47 = vcmask 261120
    %v49 = vsel %vm47, %v32, 0
    %v52 = vsel %vm47, %v33, 0
    %v55 = vsel %vm47, %v34, 0
    %v58 = vsel %vm47, %v35, 0
    %v61 = vsel %vm47, %v36, 0
    %v64 = vsel %vm47, %v37, 0
    %66 = vmatprep.subr.mxu0 0.0
    %67 = vmatpush1.msra.mxu0 %v39
    %68 = vmatprep.subr.mxu0 0.0
    %69 = vmatpush1.msra.mxu0 %v40
    %70 = vmatprep.subr.mxu0 0.0
    %71 = vmatpush1.msra.mxu0 %v41
    %72 = vmatprep.subr.mxu0 0.0
    %73 = vmatpush1.msra.mxu0 %v42
    %74 = vmatprep.subr.mxu0 0.0
    %75 = vmatpush1.msra.mxu0 0.0
    %76 = vmatprep.subr.mxu0 0.0
    %77 = vmatpush1.msra.mxu0 0.0
    %78 = vmatprep.subr.mxu0 0.0
    %79 = vmatpush1.msra.mxu0 0.0
    %80 = vmatprep.subr.mxu0 0.0
    %81 = vmatpush1.msra.mxu0 0.0
    %82 = vmatprep.subr.mxu0 0.0
    %83 = vmatpush1.msra.mxu0 0.0
    %84 = vmatprep.subr.mxu0 0.0
    %85 = vmatpush1.msra.mxu0 0.0
    %86 = vmatprep.subr.mxu0 0.0
    %87 = vmatpush1.msra.mxu0 0.0
    %88 = vmatprep.subr.mxu0 0.0
    %89 = vmatpush1.msra.mxu0 0.0
    %90 = vmatprep.subr.mxu0 0.0
    %91 = vmatpush1.msra.mxu0 0.0
    %92 = vmatprep.subr.mxu0 0.0
    %93 = vmatpush1.msra.mxu0 0.0
    %94 = vmatprep.subr.mxu0 0.0
    %95 = vmatpush1.msra.mxu0 0.0
    %96 = vmatprep.subr.mxu0 0.0
    %97 = vmatpush1.msra.mxu0 0.0
    %98 = vmatprep.subr.mxu0 0.0
    %99 = vmatpush1.msra.mxu0 0.0
    %100 = vmatprep.subr.mxu0 0.0
    %101 = vmatpush1.msra.mxu0 0.0
    %102 = vmatprep.subr.mxu0 0.0
    %103 = vmatpush1.msra.mxu0 0.0
    %104 = vmatprep.subr.mxu0 0.0
    %105 = vmatpush1.msra.mxu0 0.0
    %106 = vmatprep.subr.mxu0 0.0
    %107 = vmatpush1.msra.mxu0 0.0
    %108 = vmatprep.subr.mxu0 0.0
    %109 = vmatpush1.msra.mxu0 0.0
    %110 = vmatprep.subr.mxu0 0.0
    %111 = vmatpush1.msra.mxu0 0.0
    %112 = vmatprep.subr.mxu0 0.0
    %113 = vmatpush1.msra.mxu0 0.0
    %114 = vmatprep.subr.mxu0 0.0
    %115 = vmatpush1.msra.mxu0 0.0
    %116 = vmatprep.subr.mxu0 0.0
    %117 = vmatpush1.msra.mxu0 0.0
    %118 = vmatprep.subr.mxu0 0.0
    %119 = vmatpush1.msra.mxu0 0.0
    %120 = vmatprep.subr.mxu0 0.0
    %121 = vmatpush1.msra.mxu0 0.0
    %122 = vmatprep.subr.mxu0 0.0
    %123 = vmatpush1.msra.mxu0 0.0
    %124 = vmatprep.subr.mxu0 0.0
    %125 = vmatpush1.msra.mxu0 0.0
    %126 = vmatprep.subr.mxu0 0.0
    %127 = vmatpush1.msra.mxu0 0.0
    %128 = vmatprep.subr.mxu0 0.0
    %129 = vmatpush1.msra.mxu0 0.0
    %130 = vmatprep.mubr.f32.mxu0 0.0
    %131 = vmatmul.mubr.f32.gmra.mrb[0].mxu0 %v49
    %v132 = vpop.f32.mrb[0].mxu0
    %v133 = vadd.f32 %v46, %v132
    %v134 = vpop.f32.mrb[0].mxu0
    %135 = vmatprep.mubr.f32.mxu0 0.0
    %136 = vmatmul.mubr.f32.gmra.mrb[0].mxu0 %v52
    %v137 = vpop.f32.mrb[0].mxu0
    %v138 = vadd.f32 %v46, %v137
    %v139 = vpop.f32.mrb[0].mxu0
    %140 = vmatprep.mubr.f32.mxu0 0.0
    %141 = vmatmul.mubr.f32.gmra.mrb[0].mxu0 %v55
    %v142 = vpop.f32.mrb[0].mxu0
    %v143 = vadd.f32 %v46, %v142
    %v144 = vpop.f32.mrb[0].mxu0
    %145 = vmatprep.mubr.f32.mxu0 0.0
    %146 = vmatmul.mubr.f32.gmra.mrb[0].mxu0 %v58
    %v147 = vpop.f32.mrb[0].mxu0
    %v148 = vadd.f32 %v46, %v147
    %v149 = vpop.f32.mrb[0].mxu0
    %150 = vmatprep.mubr.f32.mxu0 0.0
    %151 = vmatmul.mubr.f32.gmra.mrb[0].mxu0 %v61
    %v152 = vpop.f32.mrb[0].mxu0
    %v153 = vadd.f32 %v46, %v152
    %v154 = vpop.f32.mrb[0].mxu0
    %155 = vmatprep.mubr.f32.mxu0 0.0
    %156 = vmatmul.mubr.f32.gmra.mrb[0].mxu0 %v64
    %v157 = vpop.f32.mrb[0].mxu0
    %v158 = vadd.f32 %v46, %v157
    %v159 = vpop.f32.mrb[0].mxu0
    %160 = vdwg.mxu0
    %v161 = vtanh.pop %v133
    %v162 = vtanh.pop %v138
    %v163 = vtanh.pop %v143
    %v164 = vtanh.pop %v148
    %v165 = vtanh.pop %v153
    %v166 = vtanh.pop %v158
    %s167 = scalar_lea.vmem [#allocation2], 128
    %v168 = vld [vmem:[%s167] sm:$0xff]
    %v169 = vld [vmem:[%s167 + $0x8] sm:$0xff]
    %v170 = vld [vmem:[%s167 + $0x10] sm:$0xff]
    %v171 = vld [vmem:[%s167 + $0x18] sm:$0xff]
    %v172 = vld [vmem:[%s167 + $0x20] sm:$0xff]
    %v173 = vld [vmem:[%s167 + $0x28] sm:$0xff]
    %v174 = vld [vmem:[%s167 + $0x30] sm:$0xff]
    %v175 = vld [vmem:[%s167 + $0x38] sm:$0xff]
    %v176 = vld [vmem:[%s167 + $0x40] sm:$0xff]
    %v177 = vld [vmem:[%s167 + $0x48] sm:$0xff]
    %v178 = vld [vmem:[%s167 + $0x50] sm:$0xff]
    %v179 = vld [vmem:[%s167 + $0x58] sm:$0xff]
    %v180 = vld [vmem:[%s167 + $0x60] sm:$0xff]
    %v181 = vld [vmem:[%s167 + $0x68] sm:$0xff]
    %v182 = vld [vmem:[%s167 + $0x70] sm:$0xff]
    %v183 = vld [vmem:[%s167 + $0x78] sm:$0xff]
    %v184 = vlaneseq
    %v185 = vshrl.u32 %v184, 7
    %v186 = vsub.s32 1, %v185
    %v187 = vrot.slane %v38, %v186
    %188 = vmatprep.subr.mxu0 0.0
    %189 = vmatpush1.msra.mxu0 %v168
    %190 = vmatprep.subr.mxu0 0.0
    %191 = vmatpush1.msra.mxu0 %v169
    %192 = vmatprep.subr.mxu0 0.0
    %193 = vmatpush1.msra.mxu0 %v170
    %194 = vmatprep.subr.mxu0 0.0
    %195 = vmatpush1.msra.mxu0 %v171
    %196 = vmatprep.subr.mxu0 0.0
    %197 = vmatpush1.msra.mxu0 %v172
    %198 = vmatprep.subr.mxu0 0.0
    %199 = vmatpush1.msra.mxu0 %v173
    %200 = vmatprep.subr.mxu0 0.0
    %201 = vmatpush1.msra.mxu0 %v174
    %202 = vmatprep.subr.mxu0 0.0
    %203 = vmatpush1.msra.mxu0 %v175
    %204 = vmatprep.subr.mxu0 0.0
    %205 = vmatpush1.msra.mxu0 %v176
    %206 = vmatprep.subr.mxu0 0.0
    %207 = vmatpush1.msra.mxu0 %v177
    %208 = vmatprep.subr.mxu0 0.0
    %209 = vmatpush1.msra.mxu0 %v178
    %210 = vmatprep.subr.mxu0 0.0
    %211 = vmatpush1.msra.mxu0 %v179
    %212 = vmatprep.subr.mxu0 0.0
    %213 = vmatpush1.msra.mxu0 %v180
    %214 = vmatprep.subr.mxu0 0.0
    %215 = vmatpush1.msra.mxu0 %v181
    %216 = vmatprep.subr.mxu0 0.0
    %217 = vmatpush1.msra.mxu0 %v182
    %218 = vmatprep.subr.mxu0 0.0
    %219 = vmatpush1.msra.mxu0 %v183
    %220 = vmatprep.subr.mxu0 0.0
    %221 = vmatpush1.msra.mxu0 0.0
    %222 = vmatprep.subr.mxu0 0.0
    %223 = vmatpush1.msra.mxu0 0.0
    %224 = vmatprep.subr.mxu0 0.0
    %225 = vmatpush1.msra.mxu0 0.0
    %226 = vmatprep.subr.mxu0 0.0
    %227 = vmatpush1.msra.mxu0 0.0
    %228 = vmatprep.subr.mxu0 0.0
    %229 = vmatpush1.msra.mxu0 0.0
    %230 = vmatprep.subr.mxu0 0.0
    %231 = vmatpush1.msra.mxu0 0.0
    %232 = vmatprep.subr.mxu0 0.0
    %233 = vmatpush1.msra.mxu0 0.0
    %234 = vmatprep.subr.mxu0 0.0
    %235 = vmatpush1.msra.mxu0 0.0
    %236 = vmatprep.subr.mxu0 0.0
    %237 = vmatpush1.msra.mxu0 0.0
    %238 = vmatprep.subr.mxu0 0.0
    %239 = vmatpush1.msra.mxu0 0.0
    %240 = vmatprep.subr.mxu0 0.0
    %241 = vmatpush1.msra.mxu0 0.0
    %242 = vmatprep.subr.mxu0 0.0
    %243 = vmatpush1.msra.mxu0 0.0
    %244 = vmatprep.subr.mxu0 0.0
    %245 = vmatpush1.msra.mxu0 0.0
    %246 = vmatprep.subr.mxu0 0.0
    %247 = vmatpush1.msra.mxu0 0.0
    %248 = vmatprep.subr.mxu0 0.0
    %249 = vmatpush1.msra.mxu0 0.0
    %250 = vmatprep.subr.mxu0 0.0
    %251 = vmatpush1.msra.mxu0 0.0
    %252 = vmatprep.mubr.f32.mxu0 0.0
    %253 = vmatmul.mubr.f32.gmra.mrb[0].mxu0 %v161
    %v254 = vpop.f32.mrb[0].mxu0
    %v255 = vadd.f32 %v187, %v254
    %v256 = vpop.f32.mrb[0].mxu0
    %257 = vmatprep.mubr.f32.mxu0 0.0
    %258 = vmatmul.mubr.f32.gmra.mrb[0].mxu0 %v162
    %v259 = vpop.f32.mrb[0].mxu0
    %v260 = vadd.f32 %v187, %v259
    %v261 = vpop.f32.mrb[0].mxu0
    %262 = vmatprep.mubr.f32.mxu0 0.0
    %263 = vmatmul.mubr.f32.gmra.mrb[0].mxu0 %v163
    %v264 = vpop.f32.mrb[0].mxu0
    %v265 = vadd.f32 %v187, %v264
    %v266 = vpop.f32.mrb[0].mxu0
    %267 = vmatprep.mubr.f32.mxu0 0.0
    %268 = vmatmul.mubr.f32.gmra.mrb[0].mxu0 %v164
    %v269 = vpop.f32.mrb[0].mxu0
    %v270 = vadd.f32 %v187, %v269
    %v271 = vpop.f32.mrb[0].mxu0
    %272 = vmatprep.mubr.f32.mxu0 0.0
    %273 = vmatmul.mubr.f32.gmra.mrb[0].mxu0 %v165
    %v274 = vpop.f32.mrb[0].mxu0
    %v275 = vadd.f32 %v187, %v274
    %v276 = vpop.f32.mrb[0].mxu0
    %277 = vmatprep.mubr.f32.mxu0 0.0
    %278 = vmatmul.mubr.f32.gmra.mrb[0].mxu0 %v166
    %v279 = vpop.f32.mrb[0].mxu0
    %v280 = vadd.f32 %v187, %v279
    %v281 = vpop.f32.mrb[0].mxu0
    %282 = vdwg.mxu0
    %v283 = vtanh.pop %v255
    %v284 = vtanh.pop %v260
    %v285 = vtanh.pop %v265
    %v286 = vtanh.pop %v270
    %v287 = vtanh.pop %v275
    %v288 = vtanh.pop %v280
    %s289 = scalar_lea.vmem [#allocation2], 256
    %v290 = vld [vmem:[%s289] sm:$0xff]
    %v291 = vld [vmem:[%s289 + $0x8] sm:$0xff]
    %v292 = vld [vmem:[%s289 + $0x10] sm:$0xff]
    %v293 = vld [vmem:[%s289 + $0x18] sm:$0xff]
    %v294 = vld [vmem:[%s289 + $0x20] sm:$0xff]
    %v295 = vld [vmem:[%s289 + $0x28] sm:$0xff]
    %v296 = vld [vmem:[%s289 + $0x30] sm:$0xff]
    %v297 = vld [vmem:[%s289 + $0x38] sm:$0xff]
    %v298 = vld [vmem:[%s289 + $0x40] sm:$0xff]
    %v299 = vld [vmem:[%s289 + $0x48] sm:$0xff]
    %v300 = vld [vmem:[%s289 + $0x50] sm:$0xff]
    %v301 = vld [vmem:[%s289 + $0x58] sm:$0xff]
    %v302 = vld [vmem:[%s289 + $0x60] sm:$0xff]
    %v303 = vld [vmem:[%s289 + $0x68] sm:$0xff]
    %v304 = vld [vmem:[%s289 + $0x70] sm:$0xff]
    %v305 = vld [vmem:[%s289 + $0x78] sm:$0xff]
    %v306 = vlaneseq
    %v307 = vshrl.u32 %v306, 7
    %v308 = vsub.s32 2, %v307
    %v309 = vrot.slane %v38, %v308
    %310 = vmatprep.subr.mxu0 0.0
    %311 = vmatpush1.msra.mxu0 %v290
    %312 = vmatprep.subr.mxu0 0.0
    %313 = vmatpush1.msra.mxu0 %v291
    %314 = vmatprep.subr.mxu0 0.0
    %315 = vmatpush1.msra.mxu0 %v292
    %316 = vmatprep.subr.mxu0 0.0
    %317 = vmatpush1.msra.mxu0 %v293
    %318 = vmatprep.subr.mxu0 0.0
    %319 = vmatpush1.msra.mxu0 %v294
    %320 = vmatprep.subr.mxu0 0.0
    %321 = vmatpush1.msra.mxu0 %v295
    %322 = vmatprep.subr.mxu0 0.0
    %323 = vmatpush1.msra.mxu0 %v296
    %324 = vmatprep.subr.mxu0 0.0
    %325 = vmatpush1.msra.mxu0 %v297
    %326 = vmatprep.subr.mxu0 0.0
    %327 = vmatpush1.msra.mxu0 %v298
    %328 = vmatprep.subr.mxu0 0.0
    %329 = vmatpush1.msra.mxu0 %v299
    %330 = vmatprep.subr.mxu0 0.0
    %331 = vmatpush1.msra.mxu0 %v300
    %332 = vmatprep.subr.mxu0 0.0
    %333 = vmatpush1.msra.mxu0 %v301
    %334 = vmatprep.subr.mxu0 0.0
    %335 = vmatpush1.msra.mxu0 %v302
    %336 = vmatprep.subr.mxu0 0.0
    %337 = vmatpush1.msra.mxu0 %v303
    %338 = vmatprep.subr.mxu0 0.0
    %339 = vmatpush1.msra.mxu0 %v304
    %340 = vmatprep.subr.mxu0 0.0
    %341 = vmatpush1.msra.mxu0 %v305
    %342 = vmatprep.subr.mxu0 0.0
    %343 = vmatpush1.msra.mxu0 0.0
    %344 = vmatprep.subr.mxu0 0.0
    %345 = vmatpush1.msra.mxu0 0.0
    %346 = vmatprep.subr.mxu0 0.0
    %347 = vmatpush1.msra.mxu0 0.0
    %348 = vmatprep.subr.mxu0 0.0
    %349 = vmatpush1.msra.mxu0 0.0
    %350 = vmatprep.subr.mxu0 0.0
    %351 = vmatpush1.msra.mxu0 0.0
    %352 = vmatprep.subr.mxu0 0.0
    %353 = vmatpush1.msra.mxu0 0.0
    %354 = vmatprep.subr.mxu0 0.0
    %355 = vmatpush1.msra.mxu0 0.0
    %356 = vmatprep.subr.mxu0 0.0
    %357 = vmatpush1.msra.mxu0 0.0
    %358 = vmatprep.subr.mxu0 0.0
    %359 = vmatpush1.msra.mxu0 0.0
    %360 = vmatprep.subr.mxu0 0.0
    %361 = vmatpush1.msra.mxu0 0.0
    %362 = vmatprep.subr.mxu0 0.0
    %363 = vmatpush1.msra.mxu0 0.0
    %364 = vmatprep.subr.mxu0 0.0
    %365 = vmatpush1.msra.mxu0 0.0
    %366 = vmatprep.subr.mxu0 0.0
    %367 = vmatpush1.msra.mxu0 0.0
    %368 = vmatprep.subr.mxu0 0.0
    %369 = vmatpush1.msra.mxu0 0.0
    %370 = vmatprep.subr.mxu0 0.0
    %371 = vmatpush1.msra.mxu0 0.0
    %372 = vmatprep.subr.mxu0 0.0
    %373 = vmatpush1.msra.mxu0 0.0
    %374 = vmatprep.mubr.f32.mxu0 0.0
    %375 = vmatmul.mubr.f32.gmra.mrb[0].mxu0 %v283
    %v376 = vpop.f32.mrb[0].mxu0
    %v377 = vadd.f32 %v309, %v376
    %v378 = vpop.f32.mrb[0].mxu0
    %379 = vmatprep.mubr.f32.mxu0 0.0
    %380 = vmatmul.mubr.f32.gmra.mrb[0].mxu0 %v284
    %v381 = vpop.f32.mrb[0].mxu0
    %v382 = vadd.f32 %v309, %v381
    %v383 = vpop.f32.mrb[0].mxu0
    %384 = vmatprep.mubr.f32.mxu0 0.0
    %385 = vmatmul.mubr.f32.gmra.mrb[0].mxu0 %v285
    %v386 = vpop.f32.mrb[0].mxu0
    %v387 = vadd.f32 %v309, %v386
    %v388 = vpop.f32.mrb[0].mxu0
    %389 = vmatprep.mubr.f32.mxu0 0.0
    %390 = vmatmul.mubr.f32.gmra.mrb[0].mxu0 %v286
    %v391 = vpop.f32.mrb[0].mxu0
    %v392 = vadd.f32 %v309, %v391
    %v393 = vpop.f32.mrb[0].mxu0
    %394 = vmatprep.mubr.f32.mxu0 0.0
    %395 = vmatmul.mubr.f32.gmra.mrb[0].mxu0 %v287
    %v396 = vpop.f32.mrb[0].mxu0
    %v397 = vadd.f32 %v309, %v396
    %v398 = vpop.f32.mrb[0].mxu0
    %399 = vmatprep.mubr.f32.mxu0 0.0
    %400 = vmatmul.mubr.f32.gmra.mrb[0].mxu0 %v288
    %v401 = vpop.f32.mrb[0].mxu0
    %v402 = vadd.f32 %v309, %v401
    %v403 = vpop.f32.mrb[0].mxu0
    %404 = vdwg.mxu0
    %405 = vmax.xlane.f32.xlu0 %v377
    %v406 = vpop.xlane.xlu0 %405
    %407 = vmax.xlane.f32.xlu0 %v382
    %v408 = vpop.xlane.xlu0 %407
    %409 = vmax.xlane.f32.xlu0 %v387
    %v410 = vpop.xlane.xlu0 %409
    %411 = vmax.xlane.f32.xlu0 %v392
    %v412 = vpop.xlane.xlu0 %411
    %413 = vmax.xlane.f32.xlu0 %v397
    %v414 = vpop.xlane.xlu0 %413
    %415 = vmax.xlane.f32.xlu0 %v402
    %v416 = vpop.xlane.xlu0 %415
    %v417 = vsub.f32 %v377, %v406
    %v418 = vsub.f32 %v382, %v408
    %v419 = vsub.f32 %v387, %v410
    %v420 = vsub.f32 %v392, %v412
    %v421 = vsub.f32 %v397, %v414
    %v422 = vsub.f32 %v402, %v416
    %v423 = vmul.f32 %v417, 1.442695
    %v424 = vpow.pop %v423
    %v425 = vmul.f32 %v418, 1.442695
    %v426 = vpow.pop %v425
    %v427 = vmul.f32 %v419, 1.442695
    %v428 = vpow.pop %v427
    %v429 = vmul.f32 %v420, 1.442695
    %v430 = vpow.pop %v429
    %v431 = vmul.f32 %v421, 1.442695
    %v432 = vpow.pop %v431
    %v433 = vmul.f32 %v422, 1.442695
    %v434 = vpow.pop %v433
    %435 = vadd.xlane.f32.xlu0 %v424
    %v436 = vpop.xlane.xlu0 %435
    %437 = vadd.xlane.f32.xlu0 %v426
    %v438 = vpop.xlane.xlu0 %437
    %439 = vadd.xlane.f32.xlu0 %v428
    %v440 = vpop.xlane.xlu0 %439
    %441 = vadd.xlane.f32.xlu0 %v430
    %v442 = vpop.xlane.xlu0 %441
    %443 = vadd.xlane.f32.xlu0 %v432
    %v444 = vpop.xlane.xlu0 %443
    %445 = vadd.xlane.f32.xlu0 %v434
    %v446 = vpop.xlane.xlu0 %445
    %v447 = vlog2.pop %v436
    %v448 = vmul.f32 %v447, 0.6931472
    %v449 = vlog2.pop %v438
    %v450 = vmul.f32 %v449, 0.6931472
    %v451 = vlog2.pop %v440
    %v452 = vmul.f32 %v451, 0.6931472
    %v453 = vlog2.pop %v442
    %v454 = vmul.f32 %v453, 0.6931472
    %v455 = vlog2.pop %v444
    %v456 = vmul.f32 %v455, 0.6931472
    %v457 = vlog2.pop %v446
    %v458 = vmul.f32 %v457, 0.6931472
    %v459 = vadd.f32 %v448, %v406
    %v460 = vadd.f32 %v450, %v408
    %v461 = vadd.f32 %v452, %v410
    %v462 = vadd.f32 %v454, %v412
    %v463 = vadd.f32 %v456, %v414
    %v464 = vadd.f32 %v458, %v416
    %v465 = vld [vmem:[%s1] sm:$0xff]
    %v466 = vld [vmem:[%s1 + $0x8] sm:$0xff]
    %v467 = vld [vmem:[%s1 + $0x10] sm:$0xff]
    %v468 = vld [vmem:[%s1 + $0x18] sm:$0xff]
    %v469 = vld [vmem:[%s1 + $0x20] sm:$0xff]
    %v470 = vld [vmem:[%s1 + $0x28] sm:$0xff]
    %v471 = vlaneseq
    %v472 = vand.u32 %v471, 127
    %473 = vset.pattern.permute.xlu0 0
    %474 = vperm.xlu0 %473, %v465
    %v475 = vpop.permute.xlu0 %474
    %476 = vset.pattern.permute.xlu0 0
    %477 = vperm.xlu0 %476, %v466
    %v478 = vpop.permute.xlu0 %477
    %479 = vset.pattern.permute.xlu0 0
    %480 = vperm.xlu0 %479, %v467
    %v481 = vpop.permute.xlu0 %480
    %482 = vset.pattern.permute.xlu0 0
    %483 = vperm.xlu0 %482, %v468
    %v484 = vpop.permute.xlu0 %483
    %485 = vset.pattern.permute.xlu0 0
    %486 = vperm.xlu0 %485, %v469
    %v487 = vpop.permute.xlu0 %486
    %488 = vset.pattern.permute.xlu0 0
    %489 = vperm.xlu0 %488, %v470
    %v490 = vpop.permute.xlu0 %489
    %vm491 = vcmp.eq.s32.totalorder %v472, %v475
    %vm492 = vcmp.eq.s32.totalorder %v472, %v478
    %vm493 = vcmp.eq.s32.totalorder %v472, %v481
    %vm494 = vcmp.eq.s32.totalorder %v472, %v484
    %vm495 = vcmp.eq.s32.totalorder %v472, %v487
    %vm496 = vcmp.eq.s32.totalorder %v472, %v490
    %v497 = vsub.f32 %v459, %v377
    %v498 = vsub.f32 %v460, %v382
    %v499 = vsub.f32 %v461, %v387
    %v500 = vsub.f32 %v462, %v392
    %v501 = vsub.f32 %v463, %v397
    %v502 = vsub.f32 %v464, %v402
    %v503 = vsel %vm491, %v497, 0.0
    %v504 = vsel %vm492, %v498, 0.0
    %v505 = vsel %vm493, %v499, 0.0
    %v506 = vsel %vm494, %v500, 0.0
    %v507 = vsel %vm495, %v501, 0.0
    %v508 = vsel %vm496, %v502, 0.0
    %v509 = vadd.f32 %v503, %v504
    %v510 = vadd.f32 %v509, %v505
    %v511 = vadd.f32 %v510, %v506
    %v512 = vadd.f32 %v511, %v507
    %v513 = vadd.f32 %v512, %v508
    %514 = vadd.xlane.f32.xlu0 %v513
    %v515 = vpop.xlane.xlu0 %514
    %v516 = vrot.slane %v515, 4
    %v517 = vadd.f32 %v515, %v516
    %v518 = vrot.slane %v517, 2
    %v519 = vadd.f32 %v517, %v518
    %v520 = vrot.slane %v519, 1
    %v521 = vadd.f32 %v519, %v520
    %s522 = vtos %v521
    %s523 = scalar_lea.smem [#allocation5], 0
    %524 = sst [smem:[%s523]] %s522
    // Predicated region
    $region22: #{classification_head.1} parent=1 // pred_check
      _
    $region23: #{classification_head.1} parent=1 // pred_check_branch
      %526 = sbr.rel (0) target = $region25
    $region24: #{classification_head.1} parent=1 // pred_region
      %s528 = ssub.s32 16, 16
      %529 = vsyncadd [#allocation4], %s528
      %532 = dma.smem_to_hbm [#allocation5], 16, %s4, [#allocation4]
    $region25: #{classification_head.1} parent=1 // pred_fallthru
      _
    // Predicated region
    $region26: #{classification_head.1} parent=1 // pred_check
      _
    $region27: #{classification_head.1} parent=1 // pred_check_branch
      %534 = sbr.rel (0) target = $region29
    $region28: #{classification_head.1} parent=1 // pred_region
      %535 = dma.done [#allocation4], 16
    $region29: #{classification_head.1} parent=1 // pred_fallthru
      _
    %536 = sfence
    %537 = vsyncpa [#allocation3], 1
    %538 = vsyncpa [#allocation4], 1

</llo_original>
